<compile_context>
chip_gen: v7x
topology: tpu7x:2x2x1
jax: 0.10.0
libtpu: 0.0.40
codegen_flags: <defaults>
</compile_context>

<pallas_src>
import functools

import jax
import jax.numpy as jnp
from jax.experimental import pallas as pl
from jax.experimental.pallas import tpu as pltpu


def _bmm_heads_kernel(x_ref, y_ref, o_ref, acc_ref, *, hb, n):
    # x_ref: (1, hb, tm, tk) bf16   y_ref: (1, hb, tk, n) bf16
    # o_ref: (1, tm, hb*n)   bf16   acc_ref: (tm, hb*n)   f32 scratch
    k = pl.program_id(3)

    @pl.when(k == 0)
    def _():
        acc_ref[...] = jnp.zeros_like(acc_ref)

    # Static (trace-time) unroll over the heads handled by this grid step.
    # Each head is a single 2-D MXU dot; its result lands in an adjacent,
    # statically-known lane slice of the f32 accumulator -> the permute is
    # pure layout plumbing, no XLU transpose of the result.
    for h in range(hb):
        acc_ref[:, h * n:(h + 1) * n] += jnp.dot(
            x_ref[0, h], y_ref[0, h], preferred_element_type=jnp.float32
        )

    @pl.when(k == pl.num_programs(3) - 1)
    def _():
        # Single lane-dense store of the whole (tm, hb*n) slab.
        o_ref[0] = acc_ref[...].astype(o_ref.dtype)


def bmm_permuted(x1, y1, *, tm=None, tk=None, heads_per_block=None):
    B, H, M, K = x1.shape
    B2, H2, K2, N = y1.shape
    assert (B, H, K) == (B2, H2, K2), "incompatible matmul operand shapes"

    # ---- tile selection --------------------------------------------------
    # M tile: 256-multiples for big M (MXU-friendly), otherwise the full dim.
    if tm is None:
        tm = 256 if (M > 256 and M % 256 == 0) else M
    # K tile: cap at 512 when K is large (bounds VMEM residency on v7x),
    # otherwise take the full (last-dim-legal) extent.
    if tk is None:
        tk = 512 if (K > 512 and K % 512 == 0) else K
    # Heads per grid step: smallest head group whose packed lane width
    # (hb*N) is a multiple of 128 (unmasked stores); fall back to all heads
    # so the output block spans the full lane dimension.
    if heads_per_block is None:
        hb = H
        for cand in range(1, H + 1):
            if H % cand == 0 and (cand * N) % 128 == 0:
                hb = cand
                break
    else:
        hb = heads_per_block
    assert M % tm == 0 and K % tk == 0 and H % hb == 0

    grid = (B, H // hb, M // tm, K // tk)

    # ---- VMEM budget / scheduling hints ----------------------------------
    itemsize = x1.dtype.itemsize
    per_step = (
        2 * (hb * tm * tk + hb * tk * N) * itemsize  # double-buffered inputs
        + 2 * tm * hb * N * itemsize                 # double-buffered output
        + tm * hb * N * 4                            # f32 accumulator
    )
    vmem_limit = int(min(48 * 1024 * 1024, max(16 * 1024 * 1024, 2 * per_step)))

    cost = pl.CostEstimate(
        flops=2 * B * H * M * K * N,
        transcendentals=0,
        bytes_accessed=itemsize * (B * H * M * K + B * H * K * N + B * M * H * N),
    )

    kernel = functools.partial(_bmm_heads_kernel, hb=hb, n=N)

    out_flat = pl.pallas_call(
        kernel,
        out_shape=jax.ShapeDtypeStruct((B, M, H * N), x1.dtype),
        grid_spec=pltpu.PrefetchScalarGridSpec(
            num_scalar_prefetch=0,
            grid=grid,
            in_specs=[
                pl.BlockSpec((1, hb, tm, tk), lambda b, hg, m, k: (b, hg, m, k)),
                pl.BlockSpec((1, hb, tk, N), lambda b, hg, m, k: (b, hg, k, 0)),
            ],
            out_specs=pl.BlockSpec(
                (1, tm, hb * N), lambda b, hg, m, k: (b, m, hg)
            ),
            scratch_shapes=[pltpu.VMEM((tm, hb * N), jnp.float32)],
        ),
        compiler_params=pltpu.CompilerParams(
            dimension_semantics=("parallel", "parallel", "parallel", "arbitrary"),
            vmem_limit_bytes=vmem_limit,
        ),
        cost_estimate=cost,
    )(x1, y1)

    # Free row-major reshape: (B, M, H*N) -> (B, M, H, N)  (the fused permute).
    return out_flat.reshape(B, M, H, N)


if __name__ == "__main__":
    key = jax.random.PRNGKey(0)
    k1, k2 = jax.random.split(key)

    B, H, M, K, N = 2, 4, 8, 32, 16
    x1 = jax.random.normal(k1, (B, H, M, K), dtype=jnp.float32).astype(jnp.bfloat16)
    y1 = jax.random.normal(k2, (B, H, K, N), dtype=jnp.float32).astype(jnp.bfloat16)

    out = bmm_permuted(x1, y1)
    out = jax.block_until_ready(out)

    # Reference: torch.matmul(x1, y1).permute(0, 2, 1, 3)
    ref = jnp.transpose(
        jnp.matmul(x1.astype(jnp.float32), y1.astype(jnp.float32)),
        (0, 2, 1, 3),
    )
    assert out.shape == (B, M, H, N), out.shape
    assert out.dtype == jnp.bfloat16, out.dtype
    err = jnp.max(jnp.abs(out.astype(jnp.float32) - ref))
    assert err < 1e-1, f"max abs err {err}"

    print("KERNEL_OK")
</pallas_src>

<mosaic_0001>
module attributes {stable_mosaic.version = 11 : i64} {
  func.func @_bmm_heads_kernel(%arg0: i32, %arg1: i32, %arg2: i32, %arg3: i32, %arg4: memref<1x4x8x32xbf16, #tpu.memory_space<vmem>>, %arg5: memref<1x4x32x16xbf16, #tpu.memory_space<vmem>>, %arg6: memref<1x8x64xbf16, #tpu.memory_space<vmem>>, %arg7: memref<8x64xf32, #tpu.memory_space<vmem>>) attributes {dimension_semantics = [#tpu.dimension_semantics<parallel>, #tpu.dimension_semantics<parallel>, #tpu.dimension_semantics<parallel>, #tpu.dimension_semantics<arbitrary>], iteration_bounds = array<i64: 2, 1, 1, 1>, scalar_prefetch = 0 : i64, scratch_operands = 1 : i64, tpu.core_type = #tpu.core_type<tc>, window_params = [{transform_indices = @transform_0, window_bounds = array<i64: 1, 4, 8, 32>}, {transform_indices = @transform_1, window_bounds = array<i64: 1, 4, 32, 16>}, {transform_indices = @transform_2, window_bounds = array<i64: 1, 8, 64>}]} {
    %c0_i32 = arith.constant 0 : i32
    %0 = arith.cmpi eq, %arg3, %c0_i32 : i32
    %1 = arith.extui %0 : i1 to i32
    %c0_i32_0 = arith.constant 0 : i32
    %2 = arith.cmpi ne, %1, %c0_i32_0 : i32
    scf.if %2 {
      %cst_47 = arith.constant 0.000000e+00 : f32
      %38 = vector.broadcast %cst_47 : f32 to vector<8x64xf32>
      %c0_48 = arith.constant 0 : index
      %c0_49 = arith.constant 0 : index
      %39 = vector.load %arg7[%c0_48, %c0_49] : memref<8x64xf32, #tpu.memory_space<vmem>>, vector<8x64xf32>
      tpu.vector_store %arg7[%c0_48, %c0_49], %38 {strides = array<i32>} : memref<8x64xf32, #tpu.memory_space<vmem>>, vector<8x64xf32>,
    } else {
    }
    %c0 = arith.constant 0 : index
    %c0_1 = arith.constant 0 : index
    %3 = vector.load %arg7[%c0, %c0_1] : memref<8x64xf32, #tpu.memory_space<vmem>>, vector<8x16xf32>
    %c0_2 = arith.constant 0 : index
    %c0_3 = arith.constant 0 : index
    %c0_4 = arith.constant 0 : index
    %c0_5 = arith.constant 0 : index
    %4 = vector.load %arg4[%c0_2, %c0_3, %c0_4, %c0_5] : memref<1x4x8x32xbf16, #tpu.memory_space<vmem>>, vector<1x1x8x32xbf16>
    %5 = vector.shape_cast %4 : vector<1x1x8x32xbf16> to vector<8x32xbf16>
    %c0_6 = arith.constant 0 : index
    %c0_7 = arith.constant 0 : index
    %c0_8 = arith.constant 0 : index
    %c0_9 = arith.constant 0 : index
    %6 = vector.load %arg5[%c0_6, %c0_7, %c0_8, %c0_9] : memref<1x4x32x16xbf16, #tpu.memory_space<vmem>>, vector<1x1x32x16xbf16>
    %7 = vector.shape_cast %6 : vector<1x1x32x16xbf16> to vector<32x16xbf16>
    %cst = arith.constant dense<0.000000e+00> : vector<8x16xf32>
    %8 = tpu.matmul %5, %7, %cst {dimension_numbers = #tpu.dot_dimension_numbers<[1], [0], [0], [1], [0, 0, 1, 1], [], []>} : vector<8x32xbf16>, vector<32x16xbf16>, vector<8x16xf32> -> vector<8x16xf32>
    %9 = arith.addf %3, %8 : vector<8x16xf32>
    %c0_10 = arith.constant 0 : index
    %c0_11 = arith.constant 0 : index
    %10 = vector.load %arg7[%c0_10, %c0_11] : memref<8x64xf32, #tpu.memory_space<vmem>>, vector<8x16xf32>
    tpu.vector_store %arg7[%c0_10, %c0_11], %9 {strides = array<i32>} : memref<8x64xf32, #tpu.memory_space<vmem>>, vector<8x16xf32>,
    %c0_12 = arith.constant 0 : index
    %c16 = arith.constant 16 : index
    %11 = vector.load %arg7[%c0_12, %c16] : memref<8x64xf32, #tpu.memory_space<vmem>>, vector<8x16xf32>
    %c0_13 = arith.constant 0 : index
    %c1 = arith.constant 1 : index
    %c0_14 = arith.constant 0 : index
    %c0_15 = arith.constant 0 : index
    %12 = vector.load %arg4[%c0_13, %c1, %c0_14, %c0_15] : memref<1x4x8x32xbf16, #tpu.memory_space<vmem>>, vector<1x1x8x32xbf16>
    %13 = vector.shape_cast %12 : vector<1x1x8x32xbf16> to vector<8x32xbf16>
    %c0_16 = arith.constant 0 : index
    %c1_17 = arith.constant 1 : index
    %c0_18 = arith.constant 0 : index
    %c0_19 = arith.constant 0 : index
    %14 = vector.load %arg5[%c0_16, %c1_17, %c0_18, %c0_19] : memref<1x4x32x16xbf16, #tpu.memory_space<vmem>>, vector<1x1x32x16xbf16>
    %15 = vector.shape_cast %14 : vector<1x1x32x16xbf16> to vector<32x16xbf16>
    %cst_20 = arith.constant dense<0.000000e+00> : vector<8x16xf32>
    %16 = tpu.matmul %13, %15, %cst_20 {dimension_numbers = #tpu.dot_dimension_numbers<[1], [0], [0], [1], [0, 0, 1, 1], [], []>} : vector<8x32xbf16>, vector<32x16xbf16>, vector<8x16xf32> -> vector<8x16xf32>
    %17 = arith.addf %11, %16 : vector<8x16xf32>
    %c0_21 = arith.constant 0 : index
    %c16_22 = arith.constant 16 : index
    %18 = vector.load %arg7[%c0_21, %c16_22] : memref<8x64xf32, #tpu.memory_space<vmem>>, vector<8x16xf32>
    tpu.vector_store %arg7[%c0_21, %c16_22], %17 {strides = array<i32>} : memref<8x64xf32, #tpu.memory_space<vmem>>, vector<8x16xf32>,
    %c0_23 = arith.constant 0 : index
    %c32 = arith.constant 32 : index
    %19 = vector.load %arg7[%c0_23, %c32] : memref<8x64xf32, #tpu.memory_space<vmem>>, vector<8x16xf32>
    %c0_24 = arith.constant 0 : index
    %c2 = arith.constant 2 : index
    %c0_25 = arith.constant 0 : index
    %c0_26 = arith.constant 0 : index
    %20 = vector.load %arg4[%c0_24, %c2, %c0_25, %c0_26] : memref<1x4x8x32xbf16, #tpu.memory_space<vmem>>, vector<1x1x8x32xbf16>
    %21 = vector.shape_cast %20 : vector<1x1x8x32xbf16> to vector<8x32xbf16>
    %c0_27 = arith.constant 0 : index
    %c2_28 = arith.constant 2 : index
    %c0_29 = arith.constant 0 : index
    %c0_30 = arith.constant 0 : index
    %22 = vector.load %arg5[%c0_27, %c2_28, %c0_29, %c0_30] : memref<1x4x32x16xbf16, #tpu.memory_space<vmem>>, vector<1x1x32x16xbf16>
    %23 = vector.shape_cast %22 : vector<1x1x32x16xbf16> to vector<32x16xbf16>
    %cst_31 = arith.constant dense<0.000000e+00> : vector<8x16xf32>
    %24 = tpu.matmul %21, %23, %cst_31 {dimension_numbers = #tpu.dot_dimension_numbers<[1], [0], [0], [1], [0, 0, 1, 1], [], []>} : vector<8x32xbf16>, vector<32x16xbf16>, vector<8x16xf32> -> vector<8x16xf32>
    %25 = arith.addf %19, %24 : vector<8x16xf32>
    %c0_32 = arith.constant 0 : index
    %c32_33 = arith.constant 32 : index
    %26 = vector.load %arg7[%c0_32, %c32_33] : memref<8x64xf32, #tpu.memory_space<vmem>>, vector<8x16xf32>
    tpu.vector_store %arg7[%c0_32, %c32_33], %25 {strides = array<i32>} : memref<8x64xf32, #tpu.memory_space<vmem>>, vector<8x16xf32>,
    %c0_34 = arith.constant 0 : index
    %c48 = arith.constant 48 : index
    %27 = vector.load %arg7[%c0_34, %c48] : memref<8x64xf32, #tpu.memory_space<vmem>>, vector<8x16xf32>
    %c0_35 = arith.constant 0 : index
    %c3 = arith.constant 3 : index
    %c0_36 = arith.constant 0 : index
    %c0_37 = arith.constant 0 : index
    %28 = vector.load %arg4[%c0_35, %c3, %c0_36, %c0_37] : memref<1x4x8x32xbf16, #tpu.memory_space<vmem>>, vector<1x1x8x32xbf16>
    %29 = vector.shape_cast %28 : vector<1x1x8x32xbf16> to vector<8x32xbf16>
    %c0_38 = arith.constant 0 : index
    %c3_39 = arith.constant 3 : index
    %c0_40 = arith.constant 0 : index
    %c0_41 = arith.constant 0 : index
    %30 = vector.load %arg5[%c0_38, %c3_39, %c0_40, %c0_41] : memref<1x4x32x16xbf16, #tpu.memory_space<vmem>>, vector<1x1x32x16xbf16>
    %31 = vector.shape_cast %30 : vector<1x1x32x16xbf16> to vector<32x16xbf16>
    %cst_42 = arith.constant dense<0.000000e+00> : vector<8x16xf32>
    %32 = tpu.matmul %29, %31, %cst_42 {dimension_numbers = #tpu.dot_dimension_numbers<[1], [0], [0], [1], [0, 0, 1, 1], [], []>} : vector<8x32xbf16>, vector<32x16xbf16>, vector<8x16xf32> -> vector<8x16xf32>
    %33 = arith.addf %27, %32 : vector<8x16xf32>
    %c0_43 = arith.constant 0 : index
    %c48_44 = arith.constant 48 : index
    %34 = vector.load %arg7[%c0_43, %c48_44] : memref<8x64xf32, #tpu.memory_space<vmem>>, vector<8x16xf32>
    tpu.vector_store %arg7[%c0_43, %c48_44], %33 {strides = array<i32>} : memref<8x64xf32, #tpu.memory_space<vmem>>, vector<8x16xf32>,
    %c0_i32_45 = arith.constant 0 : i32
    %35 = arith.cmpi eq, %arg3, %c0_i32_45 : i32
    %36 = arith.extui %35 : i1 to i32
    %c0_i32_46 = arith.constant 0 : i32
    %37 = arith.cmpi ne, %36, %c0_i32_46 : i32
    scf.if %37 {
      %c0_47 = arith.constant 0 : index
      %c0_48 = arith.constant 0 : index
      %38 = vector.load %arg7[%c0_47, %c0_48] : memref<8x64xf32, #tpu.memory_space<vmem>>, vector<8x64xf32>
      %39 = arith.truncf %38 : vector<8x64xf32> to vector<8x64xbf16>
      %c0_49 = arith.constant 0 : index
      %c0_50 = arith.constant 0 : index
      %c0_51 = arith.constant 0 : index
      %40 = vector.load %arg6[%c0_49, %c0_50, %c0_51] : memref<1x8x64xbf16, #tpu.memory_space<vmem>>, vector<1x8x64xbf16>
      %41 = vector.shape_cast %40 : vector<1x8x64xbf16> to vector<8x64xbf16>
      %42 = vector.shape_cast %39 : vector<8x64xbf16> to vector<1x8x64xbf16>
      tpu.vector_store %arg6[%c0_49, %c0_50, %c0_51], %42 {strides = array<i32>} : memref<1x8x64xbf16, #tpu.memory_space<vmem>>, vector<1x8x64xbf16>,
    } else {
    }
    return
  }
  func.func @transform_0(%arg0: i32, %arg1: i32, %arg2: i32, %arg3: i32) -> (i32, i32, i32, i32) {
    %c0_i32 = arith.constant 0 : i32
    return %arg0, %arg1, %arg2, %arg3 : i32, i32, i32, i32
  }
  func.func @transform_1(%arg0: i32, %arg1: i32, %arg2: i32, %arg3: i32) -> (i32, i32, i32, i32) {
    %c0_i32 = arith.constant 0 : i32
    %c0_i32_0 = arith.constant 0 : i32
    return %arg0, %arg1, %arg3, %c0_i32 : i32, i32, i32, i32
  }
  func.func @transform_2(%arg0: i32, %arg1: i32, %arg2: i32, %arg3: i32) -> (i32, i32, i32) {
    %c0_i32 = arith.constant 0 : i32
    return %arg0, %arg2, %arg1 : i32, i32, i32
  }
}

</mosaic_0001>

<llo_original>
// kernel: tpu_custom_call.1
$region0: #{tpu_custom_call.1}
  #allocation0 [shape = 'u32[]', space=smem, size = 0x4, offset = 0x4, fixed_abs, tag = 'smem constant byte address 0x4 - core index']
  #allocation1 [shape = 'u32[144,128]{1,0:T(1,128)}', space=vmem, size = 0x12000, scoped, tag = 'internal scratch']
  #allocation2 [shape = 'f32[8,64]{1,0:T(8,128)}', space=vmem, size = 0x1000, scoped, tag = 'scratch operand']
  %s0 = inlined_call_operand.vmem [shape: bf16[2,4,8,32], index: 0, kind: input, shape index: {}]
  %s1 = inlined_call_operand.vmem [shape: bf16[2,4,32,16], index: 1, kind: input, shape index: {}]
  %s2 = inlined_call_operand.hbm [shape: bf16[2,8,64], index: 2, kind: output, shape index: {}]
  %s3 = sld [smem:[#allocation0]]
  $region49: #{tpu_custom_call.1} parent=0
    _
  %s5 = ssub.s32 1, %s3
  %s6 = scalar_select 0, %s5, %s3
  $region1: #{tpu_custom_call.1} parent=0
    #allocation3 [shape = 'u8[4096]{0}', space=vmem, size = 0x1000, scoped, tag = 'output window, operand 0']
    #allocation4 [shape = 's32[2]{0}', space=sflag, size = 0x8, scoped, tag = 'scoped memory for tpu_custom_call.1']
    %7 = vsyncpa [#allocation4], 0
    %s8 = scalar_lea.sflag [#allocation4], 1
    %9 = vsyncpa %s8, 0
    loop: start=0, step=1, limit=4
    $region2: #{tpu_custom_call.1} parent=1 // loop_pre_header
      _
    $region3: #{tpu_custom_call.1} parent=1 // loop_header
      %s11 = sphi 0, %s15
      %p12 = scmp.ge.s32.totalorder %s11, 4
      %s18 = sphi 0, %s44
      %s19 = sphi 0, %s40
      %s20 = sphi 0, %s36
      %s21 = sphi 0, %s32
      %s22 = sphi 0, %s18
      %s23 = sphi 0, %s19
      %s24 = sphi 0, %s20
      %s25 = sphi 0, %s21
      %s26 = sphi 0, %s22
      %s27 = sphi 0, %s23
      %s28 = sphi 0, %s24
      %s29 = sphi 0, %s25
      %s53 = sphi 0, %s55
      %s56 = sphi 0, %s53
      %s57 = sphi 0, %s56
      %s73 = sphi 0, %s57
      %s83 = sphi 0, %s85
      %s86 = sphi 0, %s83
      %s87 = sphi 0, %s86
      %s103 = sphi 0, %s87
      %s113 = sphi 0, %s115
      %s116 = sphi 0, %s113
      %s117 = sphi 0, %s116
      %s133 = sphi 0, %s117
    $region4: #{tpu_custom_call.1} parent=1 // loop_header_branch
      %14 = sbr.rel (%p12) target = $region8
    $region5: #{tpu_custom_call.1} parent=1 // loop_body
      %s16 = ssub.s32 %s11, 1
      %s17 = ssub.s32 %s11, 2
      %s30 = sadd.s32 1, %s21
      %p31 = scmp.ge.s32.totalorder %s30, 1
      %s32 = scalar_select %p31, 0, %s30
      %s33 = sadd.s32 1, %s20
      %s34 = scalar_select %p31, %s33, %s20
      %p35 = scmp.ge.s32.totalorder %s34, 1
      %s36 = scalar_select %p35, 0, %s34
      %s37 = sadd.s32 1, %s19
      %s38 = scalar_select %p35, %s37, %s19
      %p39 = scmp.ge.s32.totalorder %s38, 1
      %s40 = scalar_select %p39, 0, %s38
      %s41 = sadd.s32 1, %s18
      %s42 = scalar_select %p39, %s41, %s18
      %p43 = scmp.ge.s32.totalorder %s42, 2
      %s44 = scalar_select %p43, 0, %s42
      %s45 = ssub.s32 %s18, %s44
      %s46 = ssub.s32 %s19, %s40
      %s47 = sor.u32 %s45, %s46
      %s48 = ssub.s32 %s20, %s36
      %s49 = sor.u32 %s47, %s48
      %s50 = ssub.s32 %s21, %s32
      %s51 = sor.u32 %s49, %s50
      %p52 = scmp.eq.s32.totalorder %s51, 0
      %s54 = sadd.s32 %s53, 1
      %s55 = scalar_select %p52, %s53, %s54
      %p58 = pneg %p52
      %p59 = scmp.eq.s32.totalorder %s11, 1
      %p60 = por %p58, %p59
      %p61 = scmp.ne.s32.totalorder %s53, %s56
      %p62 = scmp.eq.s32.totalorder %s11, 0
      %p63 = por %p61, %p62
      %p64 = scmp.ne.s32.totalorder %s53, %s56
      %p65 = scmp.eq.s32.totalorder %s16, 1
      %p66 = por %p64, %p65
      %p67 = scmp.ne.s32.totalorder %s56, %s57
      %p68 = scmp.eq.s32.totalorder %s16, 0
      %p69 = por %p67, %p68
      %p70 = scmp.ne.s32.totalorder %s56, %s57
      %p71 = scmp.eq.s32.totalorder %s17, 1
      %p72 = por %p70, %p71
      %p74 = scmp.ne.s32.totalorder %s57, %s73
      %p75 = scmp.eq.s32.totalorder %s17, 0
      %p76 = por %p74, %p75
      %s77 = ssub.s32 %s18, %s44
      %s78 = ssub.s32 %s19, %s40
      %s79 = sor.u32 %s77, %s78
      %s80 = ssub.s32 %s21, %s32
      %s81 = sor.u32 %s79, %s80
      %p82 = scmp.eq.s32.totalorder %s81, 0
      %s84 = sadd.s32 %s83, 1
      %s85 = scalar_select %p82, %s83, %s84
      %p88 = pneg %p82
      %p89 = scmp.eq.s32.totalorder %s11, 1
      %p90 = por %p88, %p89
      %p91 = scmp.ne.s32.totalorder %s83, %s86
      %p92 = scmp.eq.s32.totalorder %s11, 0
      %p93 = por %p91, %p92
      %p94 = scmp.ne.s32.totalorder %s83, %s86
      %p95 = scmp.eq.s32.totalorder %s16, 1
      %p96 = por %p94, %p95
      %p97 = scmp.ne.s32.totalorder %s86, %s87
      %p98 = scmp.eq.s32.totalorder %s16, 0
      %p99 = por %p97, %p98
      %p100 = scmp.ne.s32.totalorder %s86, %s87
      %p101 = scmp.eq.s32.totalorder %s17, 1
      %p102 = por %p100, %p101
      %p104 = scmp.ne.s32.totalorder %s87, %s103
      %p105 = scmp.eq.s32.totalorder %s17, 0
      %p106 = por %p104, %p105
      %s107 = ssub.s32 %s18, %s44
      %s108 = ssub.s32 %s20, %s36
      %s109 = sor.u32 %s107, %s108
      %s110 = ssub.s32 %s19, %s40
      %s111 = sor.u32 %s109, %s110
      %p112 = scmp.eq.s32.totalorder %s111, 0
      %s114 = sadd.s32 %s113, 1
      %s115 = scalar_select %p112, %s113, %s114
      %p118 = pneg %p112
      %p119 = scmp.eq.s32.totalorder %s11, 1
      %p120 = por %p118, %p119
      %p121 = scmp.ne.s32.totalorder %s113, %s116
      %p122 = scmp.eq.s32.totalorder %s11, 0
      %p123 = por %p121, %p122
      %p124 = scmp.ne.s32.totalorder %s113, %s116
      %p125 = scmp.eq.s32.totalorder %s16, 1
      %p126 = por %p124, %p125
      %p127 = scmp.ne.s32.totalorder %s116, %s117
      %p128 = scmp.eq.s32.totalorder %s16, 0
      %p129 = por %p127, %p128
      %p130 = scmp.ne.s32.totalorder %s116, %s117
      %p131 = scmp.eq.s32.totalorder %s17, 1
      %p132 = por %p130, %p131
      %p134 = scmp.ne.s32.totalorder %s117, %s133
      %p135 = scmp.eq.s32.totalorder %s17, 0
      %p136 = por %p134, %p135
      %p137 = scmp.le.s32.totalorder 1, %s11
      %p138 = scmp.lt.s32.totalorder %s11, 3
      %p139 = pnand %p137, %p138
      %p140 = pneg %p139
      // Predicated region
      $region9: #{tpu_custom_call.1} parent=5 // pred_check
        _
      $region10: #{tpu_custom_call.1} parent=5 // pred_check_branch
        %142 = sbr.rel (%p139) target = $region12
      $region11: #{tpu_custom_call.1} parent=5 // pred_region
        %s143 = ssub.s32 %s11, 1
      $region12: #{tpu_custom_call.1} parent=5 // pred_fallthru
        _
      %p144 = scmp.lt.s32.totalorder %s11, 2
      // Predicated region
      $region13: #{tpu_custom_call.1} parent=5 // pred_check
        %p145 = pneg %p144
      $region14: #{tpu_custom_call.1} parent=5 // pred_check_branch
        %147 = sbr.rel (%p145) target = $region16
      $region15: #{tpu_custom_call.1} parent=5 // pred_region
        // Predicated region
        $region17: #{tpu_custom_call.1} parent=15 // pred_check
          %p148 = pneg %p63
        $region18: #{tpu_custom_call.1} parent=15 // pred_check_branch
          %150 = sbr.rel (%p148) target = $region20
        $region19: #{tpu_custom_call.1} parent=15 // pred_region
          %s151 = smul.u32 4, %s19
          %p152 = scmp.lt.s32.totalorder %s18, 1
          %s153 = scalar_select %p152, %s18, 1
          %p154 = scmp.lt.s32.totalorder %s151, 3
          %s155 = scalar_select %p154, %s151, 3
          %p156 = scmp.lt.s32.totalorder %s20, 0
          %s157 = scalar_select %p156, %s20, 0
          %p158 = scmp.lt.s32.totalorder %s21, 0
          %s159 = scalar_select %p158, %s21, 0
          %s160 = sadd.s32 %s159, %s157
          %s161 = sadd.s32 %s160, %s155
          %s162 = smul.addr %s153, 4
          %s163 = sadd.s32 %s161, %s162
          %s164 = smul.addr %s163, 4
          %s165 = scalar_lea.vmem %s0, %s164
          %s166 = smul.u32 4, %s19
        $region20: #{tpu_custom_call.1} parent=15 // pred_fallthru
          _
        // Predicated region
        $region21: #{tpu_custom_call.1} parent=15 // pred_check
          %p167 = pneg %p93
        $region22: #{tpu_custom_call.1} parent=15 // pred_check_branch
          %169 = sbr.rel (%p167) target = $region24
        $region23: #{tpu_custom_call.1} parent=15 // pred_region
          %s170 = smul.u32 4, %s19
          %s171 = smul.u32 4, %s21
          %p172 = scmp.lt.s32.totalorder %s18, 1
          %s173 = scalar_select %p172, %s18, 1
          %p174 = scmp.lt.s32.totalorder %s170, 3
          %s175 = scalar_select %p174, %s170, 3
          %p176 = scmp.lt.s32.totalorder %s171, 3
          %s177 = scalar_select %p176, %s171, 3
          %s178 = smul.addr %s175, 4
          %s179 = sadd.s32 %s177, %s178
          %s180 = smul.addr %s173, 16
          %s181 = sadd.s32 %s179, %s180
          %s182 = smul.addr %s181, 4
          %s183 = scalar_lea.vmem %s1, %s182
          %s184 = smul.u32 4, %s19
          %s185 = smul.u32 4, %s21
        $region24: #{tpu_custom_call.1} parent=15 // pred_fallthru
          _
      $region16: #{tpu_custom_call.1} parent=5 // pred_fallthru
        _
      %p186 = scmp.le.s32.totalorder 1, %s11
      %p187 = scmp.lt.s32.totalorder %s11, 3
      %p188 = pnand %p186, %p187
      %p189 = pneg %p188
      // Predicated region
      $region25: #{tpu_custom_call.1} parent=5 // pred_check
        _
      $region26: #{tpu_custom_call.1} parent=5 // pred_check_branch
        %191 = sbr.rel (%p188) target = $region28
      $region27: #{tpu_custom_call.1} parent=5 // pred_region
        %s192 = ssub.s32 %s11, 1
        %s193 = smul.u32 4, %s23
        %p194 = scmp.lt.s32.totalorder %s22, 1
        %s195 = scalar_select %p194, %s22, 1
        %p196 = scmp.lt.s32.totalorder %s193, 3
        %s197 = scalar_select %p196, %s193, 3
        %p198 = scmp.lt.s32.totalorder %s24, 0
        %s199 = scalar_select %p198, %s24, 0
        %p200 = scmp.lt.s32.totalorder %s25, 0
        %s201 = scalar_select %p200, %s25, 0
        %s202 = sadd.s32 %s201, %s199
        %s203 = sadd.s32 %s202, %s197
        %s204 = smul.addr %s195, 4
        %s205 = sadd.s32 %s203, %s204
        %s206 = smul.addr %s205, 4
        %s207 = scalar_lea.vmem %s0, %s206
        %p208 = pneg %p69
        %p209 = pneg %p66
        %s210 = smul.u32 4, %s23
        %s211 = smul.u32 4, %s25
        %p212 = scmp.lt.s32.totalorder %s22, 1
        %s213 = scalar_select %p212, %s22, 1
        %p214 = scmp.lt.s32.totalorder %s210, 3
        %s215 = scalar_select %p214, %s210, 3
        %p216 = scmp.lt.s32.totalorder %s211, 3
        %s217 = scalar_select %p216, %s211, 3
        %s218 = smul.addr %s215, 4
        %s219 = sadd.s32 %s217, %s218
        %s220 = smul.addr %s213, 16
        %s221 = sadd.s32 %s219, %s220
        %s222 = smul.addr %s221, 4
        %s223 = scalar_lea.vmem %s1, %s222
        %p224 = pneg %p99
        %p225 = pneg %p96
        %p226 = pneg %p129
        %p227 = pneg %p126
        %s228 = sand.u32 %s116, 1
        %s229 = scalar_lea.sflag [#allocation4], %s228
        %s230 = sand.u32 %s116, 1
        %s231 = smul.addr %s230, 4
        %s232 = scalar_lea.vmem [#allocation3], %s231
        %s233 = smul.u32 4, %s23
        %p234 = scmp.lt.s32.totalorder %s22, 1
        %s235 = scalar_select %p234, %s22, 1
        %p236 = scmp.lt.s32.totalorder %s233, 3
        %s237 = scalar_select %p236, %s233, 3
        %p238 = scmp.lt.s32.totalorder %s24, 0
        %s239 = scalar_select %p238, %s24, 0
        %p240 = scmp.lt.s32.totalorder %s25, 0
        %s241 = scalar_select %p240, %s25, 0
        %s242 = sadd.s32 %s241, %s239
        %s243 = sadd.s32 %s242, %s237
        %s244 = smul.addr %s235, 4
        %s245 = sadd.s32 %s243, %s244
        %s246 = smul.addr %s245, 4
        %s247 = scalar_lea.vmem %s0, %s246
        %s248 = smul.u32 4, %s23
        %s249 = smul.u32 4, %s23
        %s250 = smul.u32 4, %s25
        %p251 = scmp.lt.s32.totalorder %s22, 1
        %s252 = scalar_select %p251, %s22, 1
        %p253 = scmp.lt.s32.totalorder %s249, 3
        %s254 = scalar_select %p253, %s249, 3
        %p255 = scmp.lt.s32.totalorder %s250, 3
        %s256 = scalar_select %p255, %s250, 3
        %s257 = smul.addr %s254, 4
        %s258 = sadd.s32 %s256, %s257
        %s259 = smul.addr %s252, 16
        %s260 = sadd.s32 %s258, %s259
        %s261 = smul.addr %s260, 4
        %s262 = scalar_lea.vmem %s1, %s261
        %s263 = smul.u32 4, %s23
        %s264 = smul.u32 4, %s25
        %p266 = scmp.eq.s32.totalorder %s25, 0
        // Predicated region
        $region29: #{tpu_custom_call.1} parent=27 // pred_check
          %p267 = pneg %p266
        $region30: #{tpu_custom_call.1} parent=27 // pred_check_branch
          %269 = sbr.rel (%p267) target = $region32
        $region31: #{tpu_custom_call.1} parent=27 // pred_region
          %vm270 = vcmask 523264
          %271 = vst.msk [vmem:[#allocation2] sm:$0xff] %vm270, 0.0
        $region32: #{tpu_custom_call.1} parent=27 // pred_fallthru
          _
        %v272 = vld [vmem:[#allocation2] sm:$0xff]
        %v273 = vld [vmem:[%s247] sm:$0xf]
        %v274 = vld [vmem:[%s262] sm:$0xf]
        %v275 = vld [vmem:[%s262 + $0x4] sm:$0xf]
        %v276 = vld [vmem:[%s262 + $0x8] sm:$0xf]
        %v277 = vld [vmem:[%s262 + $0xc] sm:$0xf]
        %v282 = vunpack.c.l.b16 %v274
        %v283 = vunpack.c.l.b16 %v275
        %v284 = vunpack.c.l.b16 %v276
        %v285 = vunpack.c.l.b16 %v277
        %v286 = vpack.c.b16 %v283, %v282
        %v287 = vpack.c.b16 %v285, %v284
        %vm290 = vcmask 261120
        %v292 = vsel %vm290, %v273, 0
        %294 = vmatprep.subr.bf16.mxu0 0
        %295 = vmatpush1.bf16.msra.mxu0 %v286
        %296 = vmatprep.subr.bf16.mxu0 0
        %297 = vmatpush1.bf16.msra.mxu0 %v287
        %298 = vmatprep.subr.bf16.mxu0 0
        %299 = vmatpush1.bf16.msra.mxu0 0
        %300 = vmatprep.subr.bf16.mxu0 0
        %301 = vmatpush1.bf16.msra.mxu0 0
        %302 = vmatprep.subr.bf16.mxu0 0
        %303 = vmatpush1.bf16.msra.mxu0 0
        %304 = vmatprep.subr.bf16.mxu0 0
        %305 = vmatpush1.bf16.msra.mxu0 0
        %306 = vmatprep.subr.bf16.mxu0 0
        %307 = vmatpush1.bf16.msra.mxu0 0
        %308 = vmatprep.subr.bf16.mxu0 0
        %309 = vmatpush1.bf16.msra.mxu0 0
        %310 = vmatprep.subr.bf16.mxu0 0
        %311 = vmatpush1.bf16.msra.mxu0 0
        %312 = vmatprep.subr.bf16.mxu0 0
        %313 = vmatpush1.bf16.msra.mxu0 0
        %314 = vmatprep.subr.bf16.mxu0 0
        %315 = vmatpush1.bf16.msra.mxu0 0
        %316 = vmatprep.subr.bf16.mxu0 0
        %317 = vmatpush1.bf16.msra.mxu0 0
        %318 = vmatprep.subr.bf16.mxu0 0
        %319 = vmatpush1.bf16.msra.mxu0 0
        %320 = vmatprep.subr.bf16.mxu0 0
        %321 = vmatpush1.bf16.msra.mxu0 0
        %322 = vmatprep.subr.bf16.mxu0 0
        %323 = vmatpush1.bf16.msra.mxu0 0
        %324 = vmatprep.subr.bf16.mxu0 0
        %325 = vmatpush1.bf16.msra.mxu0 0
        %326 = vmatprep.mubr.bf16.mxu0 0
        %327 = vmatmul.mubr.bf16.gmra.mrb[0].mxu0 %v292
        %v328 = vpop.f32.mrb[0].mxu0
        %v329 = vadd.f32 0.0, %v328
        %v330 = vpop.f32.mrb[0].mxu0
        %v331 = vpop.f32.mrb[0].mxu0
        %v332 = vpop.f32.mrb[0].mxu0
        %333 = vdwg.mxu0
        %v334 = vadd.f32 %v272, %v329
        %vm335 = vcmask 130048
        %336 = vst.msk [vmem:[#allocation2] sm:$0xff] %vm335, %v334
        %v337 = vld [vmem:[#allocation2] sm:$0xff]
        %s338 = scalar_lea.vmem %s247, 4
        %v339 = vld [vmem:[%s338] sm:$0xf]
        %s340 = scalar_lea.vmem %s262, 16
        %v341 = vld [vmem:[%s340] sm:$0xf]
        %v342 = vld [vmem:[%s340 + $0x4] sm:$0xf]
        %v343 = vld [vmem:[%s340 + $0x8] sm:$0xf]
        %v344 = vld [vmem:[%s340 + $0xc] sm:$0xf]
        %v349 = vunpack.c.l.b16 %v341
        %v350 = vunpack.c.l.b16 %v342
        %v351 = vunpack.c.l.b16 %v343
        %v352 = vunpack.c.l.b16 %v344
        %v353 = vpack.c.b16 %v350, %v349
        %v354 = vpack.c.b16 %v352, %v351
        %v358 = vsel %vm290, %v339, 0
        %360 = vmatprep.subr.bf16.mxu0 0
        %361 = vmatpush1.bf16.msra.mxu0 %v353
        %362 = vmatprep.subr.bf16.mxu0 0
        %363 = vmatpush1.bf16.msra.mxu0 %v354
        %364 = vmatprep.subr.bf16.mxu0 0
        %365 = vmatpush1.bf16.msra.mxu0 0
        %366 = vmatprep.subr.bf16.mxu0 0
        %367 = vmatpush1.bf16.msra.mxu0 0
        %368 = vmatprep.subr.bf16.mxu0 0
        %369 = vmatpush1.bf16.msra.mxu0 0
        %370 = vmatprep.subr.bf16.mxu0 0
        %371 = vmatpush1.bf16.msra.mxu0 0
        %372 = vmatprep.subr.bf16.mxu0 0
        %373 = vmatpush1.bf16.msra.mxu0 0
        %374 = vmatprep.subr.bf16.mxu0 0
        %375 = vmatpush1.bf16.msra.mxu0 0
        %376 = vmatprep.subr.bf16.mxu0 0
        %377 = vmatpush1.bf16.msra.mxu0 0
        %378 = vmatprep.subr.bf16.mxu0 0
        %379 = vmatpush1.bf16.msra.mxu0 0
        %380 = vmatprep.subr.bf16.mxu0 0
        %381 = vmatpush1.bf16.msra.mxu0 0
        %382 = vmatprep.subr.bf16.mxu0 0
        %383 = vmatpush1.bf16.msra.mxu0 0
        %384 = vmatprep.subr.bf16.mxu0 0
        %385 = vmatpush1.bf16.msra.mxu0 0
        %386 = vmatprep.subr.bf16.mxu0 0
        %387 = vmatpush1.bf16.msra.mxu0 0
        %388 = vmatprep.subr.bf16.mxu0 0
        %389 = vmatpush1.bf16.msra.mxu0 0
        %390 = vmatprep.subr.bf16.mxu0 0
        %391 = vmatpush1.bf16.msra.mxu0 0
        %392 = vmatprep.mubr.bf16.mxu0 0
        %393 = vmatmul.mubr.bf16.gmra.mrb[0].mxu0 %v358
        %v394 = vpop.f32.mrb[0].mxu0
        %v395 = vadd.f32 0.0, %v394
        %v396 = vpop.f32.mrb[0].mxu0
        %v397 = vpop.f32.mrb[0].mxu0
        %v398 = vpop.f32.mrb[0].mxu0
        %399 = vdwg.mxu0
        %401 = vrot.lane.b32.xlu0 %v395, 16
        %v402 = vpop.permute.xlu0 %401
        %v404 = vadd.f32 %v337, %v402
        %vm405 = vcmask 261248
        %406 = vst.msk [vmem:[#allocation2] sm:$0xff] %vm405, %v404
        %v407 = vld [vmem:[#allocation2] sm:$0xff]
        %s408 = scalar_lea.vmem %s247, 8
        %v409 = vld [vmem:[%s408] sm:$0xf]
        %s410 = scalar_lea.vmem %s262, 32
        %v411 = vld [vmem:[%s410] sm:$0xf]
        %v412 = vld [vmem:[%s410 + $0x4] sm:$0xf]
        %v413 = vld [vmem:[%s410 + $0x8] sm:$0xf]
        %v414 = vld [vmem:[%s410 + $0xc] sm:$0xf]
        %v419 = vunpack.c.l.b16 %v411
        %v420 = vunpack.c.l.b16 %v412
        %v421 = vunpack.c.l.b16 %v413
        %v422 = vunpack.c.l.b16 %v414
        %v423 = vpack.c.b16 %v420, %v419
        %v424 = vpack.c.b16 %v422, %v421
        %v428 = vsel %vm290, %v409, 0
        %430 = vmatprep.subr.bf16.mxu0 0
        %431 = vmatpush1.bf16.msra.mxu0 %v423
        %432 = vmatprep.subr.bf16.mxu0 0
        %433 = vmatpush1.bf16.msra.mxu0 %v424
        %434 = vmatprep.subr.bf16.mxu0 0
        %435 = vmatpush1.bf16.msra.mxu0 0
        %436 = vmatprep.subr.bf16.mxu0 0
        %437 = vmatpush1.bf16.msra.mxu0 0
        %438 = vmatprep.subr.bf16.mxu0 0
        %439 = vmatpush1.bf16.msra.mxu0 0
        %440 = vmatprep.subr.bf16.mxu0 0
        %441 = vmatpush1.bf16.msra.mxu0 0
        %442 = vmatprep.subr.bf16.mxu0 0
        %443 = vmatpush1.bf16.msra.mxu0 0
        %444 = vmatprep.subr.bf16.mxu0 0
        %445 = vmatpush1.bf16.msra.mxu0 0
        %446 = vmatprep.subr.bf16.mxu0 0
        %447 = vmatpush1.bf16.msra.mxu0 0
        %448 = vmatprep.subr.bf16.mxu0 0
        %449 = vmatpush1.bf16.msra.mxu0 0
        %450 = vmatprep.subr.bf16.mxu0 0
        %451 = vmatpush1.bf16.msra.mxu0 0
        %452 = vmatprep.subr.bf16.mxu0 0
        %453 = vmatpush1.bf16.msra.mxu0 0
        %454 = vmatprep.subr.bf16.mxu0 0
        %455 = vmatpush1.bf16.msra.mxu0 0
        %456 = vmatprep.subr.bf16.mxu0 0
        %457 = vmatpush1.bf16.msra.mxu0 0
        %458 = vmatprep.subr.bf16.mxu0 0
        %459 = vmatpush1.bf16.msra.mxu0 0
        %460 = vmatprep.subr.bf16.mxu0 0
        %461 = vmatpush1.bf16.msra.mxu0 0
        %462 = vmatprep.mubr.bf16.mxu0 0
        %463 = vmatmul.mubr.bf16.gmra.mrb[0].mxu0 %v428
        %v464 = vpop.f32.mrb[0].mxu0
        %v465 = vadd.f32 0.0, %v464
        %v466 = vpop.f32.mrb[0].mxu0
        %v467 = vpop.f32.mrb[0].mxu0
        %v468 = vpop.f32.mrb[0].mxu0
        %469 = vdwg.mxu0
        %471 = vrot.lane.b32.xlu0 %v465, 32
        %v472 = vpop.permute.xlu0 %471
        %v474 = vadd.f32 %v407, %v472
        %vm475 = vcmask 392448
        %476 = vst.msk [vmem:[#allocation2] sm:$0xff] %vm475, %v474
        %v477 = vld [vmem:[#allocation2] sm:$0xff]
        %s478 = scalar_lea.vmem %s247, 12
        %v479 = vld [vmem:[%s478] sm:$0xf]
        %s480 = scalar_lea.vmem %s262, 48
        %v481 = vld [vmem:[%s480] sm:$0xf]
        %v482 = vld [vmem:[%s480 + $0x4] sm:$0xf]
        %v483 = vld [vmem:[%s480 + $0x8] sm:$0xf]
        %v484 = vld [vmem:[%s480 + $0xc] sm:$0xf]
        %v489 = vunpack.c.l.b16 %v481
        %v490 = vunpack.c.l.b16 %v482
        %v491 = vunpack.c.l.b16 %v483
        %v492 = vunpack.c.l.b16 %v484
        %v493 = vpack.c.b16 %v490, %v489
        %v494 = vpack.c.b16 %v492, %v491
        %v498 = vsel %vm290, %v479, 0
        %500 = vmatprep.subr.bf16.mxu0 0
        %501 = vmatpush1.bf16.msra.mxu0 %v493
        %502 = vmatprep.subr.bf16.mxu0 0
        %503 = vmatpush1.bf16.msra.mxu0 %v494
        %504 = vmatprep.subr.bf16.mxu0 0
        %505 = vmatpush1.bf16.msra.mxu0 0
        %506 = vmatprep.subr.bf16.mxu0 0
        %507 = vmatpush1.bf16.msra.mxu0 0
        %508 = vmatprep.subr.bf16.mxu0 0
        %509 = vmatpush1.bf16.msra.mxu0 0
        %510 = vmatprep.subr.bf16.mxu0 0
        %511 = vmatpush1.bf16.msra.mxu0 0
        %512 = vmatprep.subr.bf16.mxu0 0
        %513 = vmatpush1.bf16.msra.mxu0 0
        %514 = vmatprep.subr.bf16.mxu0 0
        %515 = vmatpush1.bf16.msra.mxu0 0
        %516 = vmatprep.subr.bf16.mxu0 0
        %517 = vmatpush1.bf16.msra.mxu0 0
        %518 = vmatprep.subr.bf16.mxu0 0
        %519 = vmatpush1.bf16.msra.mxu0 0
        %520 = vmatprep.subr.bf16.mxu0 0
        %521 = vmatpush1.bf16.msra.mxu0 0
        %522 = vmatprep.subr.bf16.mxu0 0
        %523 = vmatpush1.bf16.msra.mxu0 0
        %524 = vmatprep.subr.bf16.mxu0 0
        %525 = vmatpush1.bf16.msra.mxu0 0
        %526 = vmatprep.subr.bf16.mxu0 0
        %527 = vmatpush1.bf16.msra.mxu0 0
        %528 = vmatprep.subr.bf16.mxu0 0
        %529 = vmatpush1.bf16.msra.mxu0 0
        %530 = vmatprep.subr.bf16.mxu0 0
        %531 = vmatpush1.bf16.msra.mxu0 0
        %532 = vmatprep.mubr.bf16.mxu0 0
        %533 = vmatmul.mubr.bf16.gmra.mrb[0].mxu0 %v498
        %v534 = vpop.f32.mrb[0].mxu0
        %v535 = vadd.f32 0.0, %v534
        %v536 = vpop.f32.mrb[0].mxu0
        %v537 = vpop.f32.mrb[0].mxu0
        %v538 = vpop.f32.mrb[0].mxu0
        %539 = vdwg.mxu0
        %541 = vrot.lane.b32.xlu0 %v535, 48
        %v542 = vpop.permute.xlu0 %541
        %v544 = vadd.f32 %v477, %v542
        %vm545 = vcmask 523648
        %546 = vst.msk [vmem:[#allocation2] sm:$0xff] %vm545, %v544
        // Predicated region
        $region33: #{tpu_custom_call.1} parent=27 // pred_check
          %p547 = pneg %p266
        $region34: #{tpu_custom_call.1} parent=27 // pred_check_branch
          %549 = sbr.rel (%p547) target = $region36
        $region35: #{tpu_custom_call.1} parent=27 // pred_region
          %v550 = vld [vmem:[#allocation2] sm:$0xff]
          %v551 = vpack.c.bf16 %v550, %v550
          %vm552 = vcmask 519168
          %553 = vst.msk [vmem:[%s232] sm:$0xf] %vm552, %v551
        $region36: #{tpu_custom_call.1} parent=27 // pred_fallthru
          _
        %s554 = sand.u32 %s116, 1
        %s555 = scalar_lea.sflag [#allocation4], %s554
        %s556 = sand.u32 %s116, 1
        %s557 = smul.addr %s556, 4
        %s558 = scalar_lea.vmem [#allocation3], %s557
        // Predicated region
        $region37: #{tpu_custom_call.1} parent=27 // pred_check
          %p559 = pneg %p126
        $region38: #{tpu_custom_call.1} parent=27 // pred_check_branch
          %561 = sbr.rel (%p559) target = $region40
        $region39: #{tpu_custom_call.1} parent=27 // pred_region
          %s563 = ssub.s32 64, 64
          %564 = vsyncadd %s555, %s563
          %s565 = sadd.s32 %s23, %s24
          %s566 = sadd.s32 %s565, %s22
          %s567 = smul.addr %s566, 64
          %s568 = scalar_lea.hbm %s2, %s567
          %s570 = sshll.u32 %s558, 4
          %s571 = int_to_ptr.vmem [resolvable:$true] %s570
          %573 = dma.vmem_to_hbm [thread:$0]  %s571, 64, %s568, %s555
        $region40: #{tpu_custom_call.1} parent=27 // pred_fallthru
          _
      $region28: #{tpu_custom_call.1} parent=5 // pred_fallthru
        _
      %p574 = scmp.le.s32.totalorder 2, %s11
      // Predicated region
      $region41: #{tpu_custom_call.1} parent=5 // pred_check
        %p575 = pneg %p574
      $region42: #{tpu_custom_call.1} parent=5 // pred_check_branch
        %577 = sbr.rel (%p575) target = $region44
      $region43: #{tpu_custom_call.1} parent=5 // pred_region
        %s578 = ssub.s32 %s11, 2
        // Predicated region
        $region45: #{tpu_custom_call.1} parent=43 // pred_check
          %p579 = pneg %p132
        $region46: #{tpu_custom_call.1} parent=43 // pred_check_branch
          %581 = sbr.rel (%p579) target = $region48
        $region47: #{tpu_custom_call.1} parent=43 // pred_region
          %s582 = sand.u32 %s117, 1
          %s583 = scalar_lea.sflag [#allocation4], %s582
          %s584 = sand.u32 %s117, 1
          %s585 = smul.addr %s584, 4
          %s586 = scalar_lea.vmem [#allocation3], %s585
          %587 = dma.done %s583, 64
        $region48: #{tpu_custom_call.1} parent=43 // pred_fallthru
          _
      $region44: #{tpu_custom_call.1} parent=5 // pred_fallthru
        _
    $region6: #{tpu_custom_call.1} parent=1 // loop_footer
      %s15 = sadd.s32 1, %s11
    $region7: #{tpu_custom_call.1} parent=1 // loop_footer_branch
      %10 = sbr.rel target = $region3
    $region8: #{tpu_custom_call.1} parent=1 // loop_exit
      _
    %588 = vsyncpa [#allocation4], 1
    %s589 = scalar_lea.sflag [#allocation4], 1
    %590 = vsyncpa %s589, 1

</llo_original>
